<compile_context>
chip_gen: v7x
topology: tpu7x:2x2x1
jax: 0.10.0
libtpu: 0.0.40
codegen_flags: <defaults>
</compile_context>

<pallas_src>
import functools

import jax
import jax.numpy as jnp
from jax.experimental import pallas as pl
from jax.experimental.pallas import tpu as pltpu

LINEAR_IN = 512   # video feature dim (== output dim, required for the final gating)
AUDIO_IN = 128    # audio feature dim
HIDDEN = 512      # projection dim


def _round_up(x, m):
    return ((x + m - 1) // m) * m


def _chip_generation():
    """Best-effort TPU generation from device_kind (None if undetectable)."""
    try:
        kind = jax.devices()[0].device_kind.lower()
    except Exception:
        return None
    for gen in (7, 6, 5, 4, 3, 2):
        if str(gen) in kind:
            return gen
    return None


def _aga_kernel(video_ref, audio_ref, wv_ref, bv_ref, wa_ref, ba_ref, out_ref,
                *, bf16_transcendentals):
    video = video_ref[...]                                   # (tm, 512) f32: gating operand

    # Matmuls on the MXU: bf16 operands, f32 accumulation.
    v = jnp.dot(video.astype(jnp.bfloat16), wv_ref[...],
                preferred_element_type=jnp.float32)
    v = jnp.maximum(v + bv_ref[...], 0.0)                    # relu(video_linear), (tm, 512) f32

    a = jnp.dot(audio_ref[...], wa_ref[...],
                preferred_element_type=jnp.float32)
    a = jnp.maximum(a + ba_ref[...], 0.0)                    # relu(audio_linear), (tm, 512) f32

    s = v + a
    if bf16_transcendentals:
        # v6e/v7x: bf16 EUP path (~2x packed tanh/exp throughput).
        s = s.astype(jnp.bfloat16)

    # tanh(s) in [-1, 1] => exp(tanh(s)) in [e^-1, e]; no max-subtraction needed.
    e = jnp.exp(jnp.tanh(s)).astype(jnp.float32)             # (tm, 512) f32
    denom = jnp.sum(e, axis=-1, keepdims=True)               # f32 accumulation
    attn = e * pl.reciprocal(denom, approx=True)             # EUP reciprocal + VPU mul

    out_ref[...] = (video * attn).astype(out_ref.dtype)


@functools.partial(jax.jit, static_argnames=("tm",))
def audio_guided_attention(video, audio, wv, bv, wa, ba, *, tm=512):
    B, D = video.shape
    assert D == LINEAR_IN, f"video feature dim must be {LINEAR_IN}"
    assert audio.shape == (B, AUDIO_IN), f"audio must be (B, {AUDIO_IN})"

    gen = _chip_generation()
    bf16_eup = gen is not None and gen >= 6   # v5e has no bf16 EUP/VPU -> keep f32 there
    multi_tc = gen is not None and gen >= 7   # v7x: 2 TensorCores per chip

    # --- tile-size / padding selection (all static Python on shapes) ---------
    B8 = _round_up(B, 8)
    tm_eff = min(tm, B8)
    if multi_tc:
        # Aim for >= 4 grid steps (>= 2 per TensorCore) while keeping tiles
        # >= 128 rows, so both cores get work and still double-buffer.  On
        # single-TC chips (v5e/v6e) the grid is a serial loop -> no split.
        target_steps = 4
        if B8 >= target_steps * 128:
            tm_eff = min(tm_eff, _round_up(-(-B8 // target_steps), 8))
    B_pad = _round_up(B, tm_eff)

    if B_pad != B:
        video_p = jnp.pad(video, ((0, B_pad - B), (0, 0)))
        audio_p = jnp.pad(audio, ((0, B_pad - B), (0, 0)))
    else:
        video_p, audio_p = video, audio

    # bf16 for the MXU operands; biases stay f32 and are added post-accumulation.
    audio_p = audio_p.astype(jnp.bfloat16)
    wv_bf = wv.astype(jnp.bfloat16)
    wa_bf = wa.astype(jnp.bfloat16)
    bv32 = bv.astype(jnp.float32).reshape(1, HIDDEN)
    ba32 = ba.astype(jnp.float32).reshape(1, HIDDEN)

    # v5e/v6e: raise the 16/32 MiB scoped-VMEM default so tm=512 tiles keep
    # full double-buffering; v7x / unknown: conservative 32 MiB budget
    # (footprint at tm=512 is ~15 MiB, well inside all physical limits).
    vmem_limit = (64 << 20) if gen in (5, 6) else (32 << 20)

    grid = (B_pad // tm_eff,)

    # Advisory cost estimate for XLA's scheduler around the custom call.
    flops = 2 * B_pad * HIDDEN * (LINEAR_IN + AUDIO_IN)
    transcendentals = B_pad * (2 * HIDDEN + 1)   # tanh + exp per lane, reciprocal per row
    bytes_accessed = (B_pad * (LINEAR_IN * 4 + AUDIO_IN * 2 + LINEAR_IN * 4)
                      + (LINEAR_IN + AUDIO_IN) * HIDDEN * 2 + 2 * HIDDEN * 4)

    kernel = functools.partial(_aga_kernel, bf16_transcendentals=bf16_eup)

    out = pl.pallas_call(
        kernel,
        out_shape=jax.ShapeDtypeStruct((B_pad, D), video.dtype),
        grid_spec=pltpu.PrefetchScalarGridSpec(
            num_scalar_prefetch=0,
            grid=grid,
            in_specs=[
                pl.BlockSpec((tm_eff, LINEAR_IN), lambda i: (i, 0)),    # video tile (f32)
                pl.BlockSpec((tm_eff, AUDIO_IN), lambda i: (i, 0)),     # audio tile (bf16)
                pl.BlockSpec((LINEAR_IN, HIDDEN), lambda i: (0, 0)),    # Wv (bf16, full)
                pl.BlockSpec((1, HIDDEN), lambda i: (0, 0)),            # bv (f32)
                pl.BlockSpec((AUDIO_IN, HIDDEN), lambda i: (0, 0)),     # Wa (bf16, full)
                pl.BlockSpec((1, HIDDEN), lambda i: (0, 0)),            # ba (f32)
            ],
            out_specs=pl.BlockSpec((tm_eff, LINEAR_IN), lambda i: (i, 0)),
        ),
        compiler_params=pltpu.CompilerParams(
            dimension_semantics=("parallel",),
            vmem_limit_bytes=vmem_limit,
        ),
        cost_estimate=pl.CostEstimate(
            flops=flops,
            transcendentals=transcendentals,
            bytes_accessed=bytes_accessed,
        ),
    )(video_p, audio_p, wv_bf, bv32, wa_bf, ba32)

    return out[:B] if B_pad != B else out


def init_params(key):
    """Deterministic init mimicking torch.nn.Linear default (U(-1/sqrt(fan_in), +))."""
    k1, k2, k3, k4 = jax.random.split(key, 4)
    bound_v = 1.0 / (LINEAR_IN ** 0.5)
    bound_a = 1.0 / (AUDIO_IN ** 0.5)
    # stored as (in_features, out_features)  (transpose of torch's weight layout)
    wv = jax.random.uniform(k1, (LINEAR_IN, HIDDEN), jnp.float32, -bound_v, bound_v)
    bv = jax.random.uniform(k2, (1, HIDDEN), jnp.float32, -bound_v, bound_v)
    wa = jax.random.uniform(k3, (AUDIO_IN, HIDDEN), jnp.float32, -bound_a, bound_a)
    ba = jax.random.uniform(k4, (1, HIDDEN), jnp.float32, -bound_a, bound_a)
    return wv, bv, wa, ba


def reference(video, audio, wv, bv, wa, ba):
    v = jax.nn.relu(video @ wv + bv)
    a = jax.nn.relu(audio @ wa + ba)
    return video * jax.nn.softmax(jnp.tanh(v + a), axis=-1)


if __name__ == "__main__":
    key = jax.random.PRNGKey(0)
    kp, kv, ka = jax.random.split(key, 3)

    B = 10  # deliberately not a multiple of 8 to exercise the padded-tail path
    video = jax.random.normal(kv, (B, LINEAR_IN), jnp.float32)
    audio = jax.random.normal(ka, (B, AUDIO_IN), jnp.float32)
    wv, bv, wa, ba = init_params(kp)

    out = audio_guided_attention(video, audio, wv, bv, wa, ba)
    out = jax.block_until_ready(out)

    ref = reference(video, audio, wv, bv, wa, ba)
    assert out.shape == (B, LINEAR_IN)
    max_err = float(jnp.max(jnp.abs(out - ref)))
    # bf16 matmuls (+ bf16 tanh/exp on v6e/v7x) + approx reciprocal -> compare
    # at a relaxed (but tight in absolute terms, outputs are O(1e-2)) tolerance
    # vs. the f32 reference.
    assert jnp.allclose(out, ref, atol=2e-3, rtol=2e-2), f"mismatch vs ref (max|err|={max_err})"

    print("KERNEL_OK")
</pallas_src>

<mosaic_0001>
module attributes {stable_mosaic.version = 11 : i64} {
  func.func @_aga_kernel(%arg0: i32, %arg1: memref<16x512xf32, #tpu.memory_space<vmem>>, %arg2: memref<16x128xbf16, #tpu.memory_space<vmem>>, %arg3: memref<512x512xbf16, #tpu.memory_space<vmem>>, %arg4: memref<1x512xf32, #tpu.memory_space<vmem>>, %arg5: memref<128x512xbf16, #tpu.memory_space<vmem>>, %arg6: memref<1x512xf32, #tpu.memory_space<vmem>>, %arg7: memref<16x512xf32, #tpu.memory_space<vmem>>) attributes {dimension_semantics = [#tpu.dimension_semantics<parallel>], iteration_bounds = array<i64: 1>, scalar_prefetch = 0 : i64, scratch_operands = 0 : i64, tpu.core_type = #tpu.core_type<tc>, window_params = [{transform_indices = @transform_0, window_bounds = array<i64: 16, 512>}, {transform_indices = @transform_1, window_bounds = array<i64: 16, 128>}, {pipeline_mode = #tpu.pipeline_mode<synchronous>, transform_indices = @transform_2, window_bounds = array<i64: 512, 512>}, {pipeline_mode = #tpu.pipeline_mode<synchronous>, transform_indices = @transform_3, window_bounds = array<i64: 1, 512>}, {pipeline_mode = #tpu.pipeline_mode<synchronous>, transform_indices = @transform_4, window_bounds = array<i64: 128, 512>}, {pipeline_mode = #tpu.pipeline_mode<synchronous>, transform_indices = @transform_5, window_bounds = array<i64: 1, 512>}, {transform_indices = @transform_6, window_bounds = array<i64: 16, 512>}]} {
    %c0 = arith.constant 0 : index
    %c0_0 = arith.constant 0 : index
    %0 = vector.load %arg1[%c0, %c0_0] : memref<16x512xf32, #tpu.memory_space<vmem>>, vector<16x512xf32>
    %1 = arith.truncf %0 : vector<16x512xf32> to vector<16x512xbf16>
    %c0_1 = arith.constant 0 : index
    %c0_2 = arith.constant 0 : index
    %2 = vector.load %arg3[%c0_1, %c0_2] : memref<512x512xbf16, #tpu.memory_space<vmem>>, vector<512x512xbf16>
    %cst = arith.constant dense<0.000000e+00> : vector<16x512xf32>
    %3 = tpu.matmul %1, %2, %cst {dimension_numbers = #tpu.dot_dimension_numbers<[1], [0], [0], [1], [0, 0, 1, 1], [], []>} : vector<16x512xbf16>, vector<512x512xbf16>, vector<16x512xf32> -> vector<16x512xf32>
    %c0_3 = arith.constant 0 : index
    %c0_4 = arith.constant 0 : index
    %4 = vector.load %arg4[%c0_3, %c0_4] : memref<1x512xf32, #tpu.memory_space<vmem>>, vector<1x512xf32>
    %5 = vector.broadcast %4 : vector<1x512xf32> to vector<16x512xf32>
    %6 = arith.addf %3, %5 : vector<16x512xf32>
    %cst_5 = arith.constant 0.000000e+00 : f32
    %7 = vector.broadcast %cst_5 : f32 to vector<16x512xf32>
    %8 = arith.maximumf %6, %7 : vector<16x512xf32>
    %c0_6 = arith.constant 0 : index
    %c0_7 = arith.constant 0 : index
    %9 = vector.load %arg2[%c0_6, %c0_7] : memref<16x128xbf16, #tpu.memory_space<vmem>>, vector<16x128xbf16>
    %c0_8 = arith.constant 0 : index
    %c0_9 = arith.constant 0 : index
    %10 = vector.load %arg5[%c0_8, %c0_9] : memref<128x512xbf16, #tpu.memory_space<vmem>>, vector<128x512xbf16>
    %cst_10 = arith.constant dense<0.000000e+00> : vector<16x512xf32>
    %11 = tpu.matmul %9, %10, %cst_10 {dimension_numbers = #tpu.dot_dimension_numbers<[1], [0], [0], [1], [0, 0, 1, 1], [], []>} : vector<16x128xbf16>, vector<128x512xbf16>, vector<16x512xf32> -> vector<16x512xf32>
    %c0_11 = arith.constant 0 : index
    %c0_12 = arith.constant 0 : index
    %12 = vector.load %arg6[%c0_11, %c0_12] : memref<1x512xf32, #tpu.memory_space<vmem>>, vector<1x512xf32>
    %13 = vector.broadcast %12 : vector<1x512xf32> to vector<16x512xf32>
    %14 = arith.addf %11, %13 : vector<16x512xf32>
    %cst_13 = arith.constant 0.000000e+00 : f32
    %15 = vector.broadcast %cst_13 : f32 to vector<16x512xf32>
    %16 = arith.maximumf %14, %15 : vector<16x512xf32>
    %17 = arith.addf %8, %16 : vector<16x512xf32>
    %18 = math.tanh %17 : vector<16x512xf32>
    %19 = math.exp %18 : vector<16x512xf32>
    %cst_14 = arith.constant dense<0.000000e+00> : vector<16xf32>
    %20 = vector.multi_reduction <add>, %19, %cst_14 [1] : vector<16x512xf32> to vector<16xf32>
    %21 = vector.shape_cast %20 : vector<16xf32> to vector<16x1xf32>
    %22 = tpu.reciprocal %21 {approx = true} : vector<16x1xf32> -> vector<16x1xf32>
    %23 = vector.broadcast %22 : vector<16x1xf32> to vector<16x512xf32>
    %24 = arith.mulf %19, %23 : vector<16x512xf32>
    %25 = arith.mulf %0, %24 : vector<16x512xf32>
    %c0_15 = arith.constant 0 : index
    %c0_16 = arith.constant 0 : index
    %26 = vector.load %arg7[%c0_15, %c0_16] : memref<16x512xf32, #tpu.memory_space<vmem>>, vector<16x512xf32>
    tpu.vector_store %arg7[%c0_15, %c0_16], %25 {strides = array<i32>} : memref<16x512xf32, #tpu.memory_space<vmem>>, vector<16x512xf32>,
    return
  }
  func.func @transform_0(%arg0: i32) -> (i32, i32) {
    %c0_i32 = arith.constant 0 : i32
    %c0_i32_0 = arith.constant 0 : i32
    return %arg0, %c0_i32 : i32, i32
  }
  func.func @transform_1(%arg0: i32) -> (i32, i32) {
    %c0_i32 = arith.constant 0 : i32
    %c0_i32_0 = arith.constant 0 : i32
    return %arg0, %c0_i32 : i32, i32
  }
  func.func @transform_2(%arg0: i32) -> (i32, i32) {
    %c0_i32 = arith.constant 0 : i32
    %c0_i32_0 = arith.constant 0 : i32
    %c0_i32_1 = arith.constant 0 : i32
    return %c0_i32, %c0_i32_0 : i32, i32
  }
  func.func @transform_3(%arg0: i32) -> (i32, i32) {
    %c0_i32 = arith.constant 0 : i32
    %c0_i32_0 = arith.constant 0 : i32
    %c0_i32_1 = arith.constant 0 : i32
    return %c0_i32, %c0_i32_0 : i32, i32
  }
  func.func @transform_4(%arg0: i32) -> (i32, i32) {
    %c0_i32 = arith.constant 0 : i32
    %c0_i32_0 = arith.constant 0 : i32
    %c0_i32_1 = arith.constant 0 : i32
    return %c0_i32, %c0_i32_0 : i32, i32
  }
  func.func @transform_5(%arg0: i32) -> (i32, i32) {
    %c0_i32 = arith.constant 0 : i32
    %c0_i32_0 = arith.constant 0 : i32
    %c0_i32_1 = arith.constant 0 : i32
    return %c0_i32, %c0_i32_0 : i32, i32
  }
  func.func @transform_6(%arg0: i32) -> (i32, i32) {
    %c0_i32 = arith.constant 0 : i32
    %c0_i32_0 = arith.constant 0 : i32
    return %arg0, %c0_i32 : i32, i32
  }
}

</mosaic_0001>

<llo_original>
// kernel: audio_guided_attention.1
$region0: #{audio_guided_attention.1}
  #allocation0 [shape = 'u32[]', space=smem, size = 0x4, offset = 0x4, fixed_abs, tag = 'smem constant byte address 0x4 - core index']
  #allocation1 [shape = 'u32[144,128]{1,0:T(1,128)}', space=vmem, size = 0x12000, scoped, tag = 'internal scratch']
  %s0 = inlined_call_operand.vmem [shape: f32[16,512], index: 0, kind: input, shape index: {}]
  %s1 = inlined_call_operand.vmem [shape: bf16[16,128], index: 1, kind: input, shape index: {}]
  %s2 = inlined_call_operand.vmem [shape: bf16[512,512], index: 2, kind: input, shape index: {}]
  %s3 = inlined_call_operand.vmem [shape: f32[1,512], index: 3, kind: input, shape index: {}]
  %s4 = inlined_call_operand.vmem [shape: bf16[128,512], index: 4, kind: input, shape index: {}]
  %s5 = inlined_call_operand.vmem [shape: f32[1,512], index: 5, kind: input, shape index: {}]
  %s6 = inlined_call_operand.hbm [shape: f32[16,512], index: 6, kind: output, shape index: {}]
  %s7 = sld [smem:[#allocation0]]
  $region34: #{audio_guided_attention.1} parent=0
    _
  %s9 = ssub.s32 1, %s7
  %s10 = scalar_select 0, %s9, %s7
  $region1: #{audio_guided_attention.1} parent=0
    #allocation2 [shape = 'u8[32768]{0}', space=vmem, size = 0x8000, scoped, tag = 'output window, operand 0, single buffered']
    #allocation3 [shape = 's32[1]{0}', space=sflag, size = 0x4, scoped, tag = 'scoped memory for audio_guided_attention.1']
    %11 = vsyncpa [#allocation3], 0
    // Predicated region
    $region2: #{audio_guided_attention.1} parent=1 // pred_check
      _
    $region3: #{audio_guided_attention.1} parent=1 // pred_check_branch
      %13 = sbr.rel (0) target = $region5
    $region4: #{audio_guided_attention.1} parent=1 // pred_region
      _
    $region5: #{audio_guided_attention.1} parent=1 // pred_fallthru
      _
    // Predicated region
    $region6: #{audio_guided_attention.1} parent=1 // pred_check
      _
    $region7: #{audio_guided_attention.1} parent=1 // pred_check_branch
      %15 = sbr.rel (0) target = $region9
    $region8: #{audio_guided_attention.1} parent=1 // pred_region
      _
    $region9: #{audio_guided_attention.1} parent=1 // pred_fallthru
      _
    // Predicated region
    $region10: #{audio_guided_attention.1} parent=1 // pred_check
      _
    $region11: #{audio_guided_attention.1} parent=1 // pred_check_branch
      %17 = sbr.rel (0) target = $region13
    $region12: #{audio_guided_attention.1} parent=1 // pred_region
      _
    $region13: #{audio_guided_attention.1} parent=1 // pred_fallthru
      _
    // Predicated region
    $region14: #{audio_guided_attention.1} parent=1 // pred_check
      _
    $region15: #{audio_guided_attention.1} parent=1 // pred_check_branch
      %19 = sbr.rel (0) target = $region17
    $region16: #{audio_guided_attention.1} parent=1 // pred_region
      _
    $region17: #{audio_guided_attention.1} parent=1 // pred_fallthru
      _
    // Predicated region
    $region18: #{audio_guided_attention.1} parent=1 // pred_check
      _
    $region19: #{audio_guided_attention.1} parent=1 // pred_check_branch
      %21 = sbr.rel (0) target = $region21
    $region20: #{audio_guided_attention.1} parent=1 // pred_region
      _
    $region21: #{audio_guided_attention.1} parent=1 // pred_fallthru
      _
    // Predicated region
    $region22: #{audio_guided_attention.1} parent=1 // pred_check
      _
    $region23: #{audio_guided_attention.1} parent=1 // pred_check_branch
      %23 = sbr.rel (0) target = $region25
    $region24: #{audio_guided_attention.1} parent=1 // pred_region
      _
    $region25: #{audio_guided_attention.1} parent=1 // pred_fallthru
      _
    %v25 = vld [vmem:[%s0] sm:$0xff]
    %v26 = vld [vmem:[%s0 + $0x8] sm:$0xff]
    %v27 = vld [vmem:[%s0 + $0x10] sm:$0xff]
    %v28 = vld [vmem:[%s0 + $0x18] sm:$0xff]
    %v29 = vld [vmem:[%s0 + $0x20] sm:$0xff]
    %v30 = vld [vmem:[%s0 + $0x28] sm:$0xff]
    %v31 = vld [vmem:[%s0 + $0x30] sm:$0xff]
    %v32 = vld [vmem:[%s0 + $0x38] sm:$0xff]
    %v33 = vpack.c.bf16 %v29, %v25
    %v34 = vpack.c.bf16 %v30, %v26
    %v35 = vpack.c.bf16 %v31, %v27
    %v36 = vpack.c.bf16 %v32, %v28
    %v37 = vld [vmem:[%s2] sm:$0xff]
    %v38 = vld [vmem:[%s2 + $0x8] sm:$0xff]
    %v39 = vld [vmem:[%s2 + $0x10] sm:$0xff]
    %v40 = vld [vmem:[%s2 + $0x18] sm:$0xff]
    %v41 = vld [vmem:[%s2 + $0x20] sm:$0xff]
    %v42 = vld [vmem:[%s2 + $0x28] sm:$0xff]
    %v43 = vld [vmem:[%s2 + $0x30] sm:$0xff]
    %v44 = vld [vmem:[%s2 + $0x38] sm:$0xff]
    %v45 = vld [vmem:[%s2 + $0x40] sm:$0xff]
    %v46 = vld [vmem:[%s2 + $0x48] sm:$0xff]
    %v47 = vld [vmem:[%s2 + $0x50] sm:$0xff]
    %v48 = vld [vmem:[%s2 + $0x58] sm:$0xff]
    %v49 = vld [vmem:[%s2 + $0x60] sm:$0xff]
    %v50 = vld [vmem:[%s2 + $0x68] sm:$0xff]
    %v51 = vld [vmem:[%s2 + $0x70] sm:$0xff]
    %v52 = vld [vmem:[%s2 + $0x78] sm:$0xff]
    %v53 = vld [vmem:[%s2 + $0x80] sm:$0xff]
    %v54 = vld [vmem:[%s2 + $0x88] sm:$0xff]
    %v55 = vld [vmem:[%s2 + $0x90] sm:$0xff]
    %v56 = vld [vmem:[%s2 + $0x98] sm:$0xff]
    %v57 = vld [vmem:[%s2 + $0xa0] sm:$0xff]
    %v58 = vld [vmem:[%s2 + $0xa8] sm:$0xff]
    %v59 = vld [vmem:[%s2 + $0xb0] sm:$0xff]
    %v60 = vld [vmem:[%s2 + $0xb8] sm:$0xff]
    %v61 = vld [vmem:[%s2 + $0xc0] sm:$0xff]
    %v62 = vld [vmem:[%s2 + $0xc8] sm:$0xff]
    %v63 = vld [vmem:[%s2 + $0xd0] sm:$0xff]
    %v64 = vld [vmem:[%s2 + $0xd8] sm:$0xff]
    %v65 = vld [vmem:[%s2 + $0xe0] sm:$0xff]
    %v66 = vld [vmem:[%s2 + $0xe8] sm:$0xff]
    %v67 = vld [vmem:[%s2 + $0xf0] sm:$0xff]
    %v68 = vld [vmem:[%s2 + $0xf8] sm:$0xff]
    %v69 = vld [vmem:[%s2 + $0x100] sm:$0xff]
    %v70 = vld [vmem:[%s2 + $0x108] sm:$0xff]
    %v71 = vld [vmem:[%s2 + $0x110] sm:$0xff]
    %v72 = vld [vmem:[%s2 + $0x118] sm:$0xff]
    %v73 = vld [vmem:[%s2 + $0x120] sm:$0xff]
    %v74 = vld [vmem:[%s2 + $0x128] sm:$0xff]
    %v75 = vld [vmem:[%s2 + $0x130] sm:$0xff]
    %v76 = vld [vmem:[%s2 + $0x138] sm:$0xff]
    %v77 = vld [vmem:[%s2 + $0x140] sm:$0xff]
    %v78 = vld [vmem:[%s2 + $0x148] sm:$0xff]
    %v79 = vld [vmem:[%s2 + $0x150] sm:$0xff]
    %v80 = vld [vmem:[%s2 + $0x158] sm:$0xff]
    %v81 = vld [vmem:[%s2 + $0x160] sm:$0xff]
    %v82 = vld [vmem:[%s2 + $0x168] sm:$0xff]
    %v83 = vld [vmem:[%s2 + $0x170] sm:$0xff]
    %v84 = vld [vmem:[%s2 + $0x178] sm:$0xff]
    %v85 = vld [vmem:[%s2 + $0x180] sm:$0xff]
    %v86 = vld [vmem:[%s2 + $0x188] sm:$0xff]
    %v87 = vld [vmem:[%s2 + $0x190] sm:$0xff]
    %v88 = vld [vmem:[%s2 + $0x198] sm:$0xff]
    %v89 = vld [vmem:[%s2 + $0x1a0] sm:$0xff]
    %v90 = vld [vmem:[%s2 + $0x1a8] sm:$0xff]
    %v91 = vld [vmem:[%s2 + $0x1b0] sm:$0xff]
    %v92 = vld [vmem:[%s2 + $0x1b8] sm:$0xff]
    %v93 = vld [vmem:[%s2 + $0x1c0] sm:$0xff]
    %v94 = vld [vmem:[%s2 + $0x1c8] sm:$0xff]
    %v95 = vld [vmem:[%s2 + $0x1d0] sm:$0xff]
    %v96 = vld [vmem:[%s2 + $0x1d8] sm:$0xff]
    %v97 = vld [vmem:[%s2 + $0x1e0] sm:$0xff]
    %v98 = vld [vmem:[%s2 + $0x1e8] sm:$0xff]
    %v99 = vld [vmem:[%s2 + $0x1f0] sm:$0xff]
    %v100 = vld [vmem:[%s2 + $0x1f8] sm:$0xff]
    %v101 = vld [vmem:[%s2 + $0x200] sm:$0xff]
    %v102 = vld [vmem:[%s2 + $0x208] sm:$0xff]
    %v103 = vld [vmem:[%s2 + $0x210] sm:$0xff]
    %v104 = vld [vmem:[%s2 + $0x218] sm:$0xff]
    %v105 = vld [vmem:[%s2 + $0x220] sm:$0xff]
    %v106 = vld [vmem:[%s2 + $0x228] sm:$0xff]
    %v107 = vld [vmem:[%s2 + $0x230] sm:$0xff]
    %v108 = vld [vmem:[%s2 + $0x238] sm:$0xff]
    %v109 = vld [vmem:[%s2 + $0x240] sm:$0xff]
    %v110 = vld [vmem:[%s2 + $0x248] sm:$0xff]
    %v111 = vld [vmem:[%s2 + $0x250] sm:$0xff]
    %v112 = vld [vmem:[%s2 + $0x258] sm:$0xff]
    %v113 = vld [vmem:[%s2 + $0x260] sm:$0xff]
    %v114 = vld [vmem:[%s2 + $0x268] sm:$0xff]
    %v115 = vld [vmem:[%s2 + $0x270] sm:$0xff]
    %v116 = vld [vmem:[%s2 + $0x278] sm:$0xff]
    %v117 = vld [vmem:[%s2 + $0x280] sm:$0xff]
    %v118 = vld [vmem:[%s2 + $0x288] sm:$0xff]
    %v119 = vld [vmem:[%s2 + $0x290] sm:$0xff]
    %v120 = vld [vmem:[%s2 + $0x298] sm:$0xff]
    %v121 = vld [vmem:[%s2 + $0x2a0] sm:$0xff]
    %v122 = vld [vmem:[%s2 + $0x2a8] sm:$0xff]
    %v123 = vld [vmem:[%s2 + $0x2b0] sm:$0xff]
    %v124 = vld [vmem:[%s2 + $0x2b8] sm:$0xff]
    %v125 = vld [vmem:[%s2 + $0x2c0] sm:$0xff]
    %v126 = vld [vmem:[%s2 + $0x2c8] sm:$0xff]
    %v127 = vld [vmem:[%s2 + $0x2d0] sm:$0xff]
    %v128 = vld [vmem:[%s2 + $0x2d8] sm:$0xff]
    %v129 = vld [vmem:[%s2 + $0x2e0] sm:$0xff]
    %v130 = vld [vmem:[%s2 + $0x2e8] sm:$0xff]
    %v131 = vld [vmem:[%s2 + $0x2f0] sm:$0xff]
    %v132 = vld [vmem:[%s2 + $0x2f8] sm:$0xff]
    %v133 = vld [vmem:[%s2 + $0x300] sm:$0xff]
    %v134 = vld [vmem:[%s2 + $0x308] sm:$0xff]
    %v135 = vld [vmem:[%s2 + $0x310] sm:$0xff]
    %v136 = vld [vmem:[%s2 + $0x318] sm:$0xff]
    %v137 = vld [vmem:[%s2 + $0x320] sm:$0xff]
    %v138 = vld [vmem:[%s2 + $0x328] sm:$0xff]
    %v139 = vld [vmem:[%s2 + $0x330] sm:$0xff]
    %v140 = vld [vmem:[%s2 + $0x338] sm:$0xff]
    %v141 = vld [vmem:[%s2 + $0x340] sm:$0xff]
    %v142 = vld [vmem:[%s2 + $0x348] sm:$0xff]
    %v143 = vld [vmem:[%s2 + $0x350] sm:$0xff]
    %v144 = vld [vmem:[%s2 + $0x358] sm:$0xff]
    %v145 = vld [vmem:[%s2 + $0x360] sm:$0xff]
    %v146 = vld [vmem:[%s2 + $0x368] sm:$0xff]
    %v147 = vld [vmem:[%s2 + $0x370] sm:$0xff]
    %v148 = vld [vmem:[%s2 + $0x378] sm:$0xff]
    %v149 = vld [vmem:[%s2 + $0x380] sm:$0xff]
    %v150 = vld [vmem:[%s2 + $0x388] sm:$0xff]
    %v151 = vld [vmem:[%s2 + $0x390] sm:$0xff]
    %v152 = vld [vmem:[%s2 + $0x398] sm:$0xff]
    %v153 = vld [vmem:[%s2 + $0x3a0] sm:$0xff]
    %v154 = vld [vmem:[%s2 + $0x3a8] sm:$0xff]
    %v155 = vld [vmem:[%s2 + $0x3b0] sm:$0xff]
    %v156 = vld [vmem:[%s2 + $0x3b8] sm:$0xff]
    %v157 = vld [vmem:[%s2 + $0x3c0] sm:$0xff]
    %v158 = vld [vmem:[%s2 + $0x3c8] sm:$0xff]
    %v159 = vld [vmem:[%s2 + $0x3d0] sm:$0xff]
    %v160 = vld [vmem:[%s2 + $0x3d8] sm:$0xff]
    %v161 = vld [vmem:[%s2 + $0x3e0] sm:$0xff]
    %v162 = vld [vmem:[%s2 + $0x3e8] sm:$0xff]
    %v163 = vld [vmem:[%s2 + $0x3f0] sm:$0xff]
    %v164 = vld [vmem:[%s2 + $0x3f8] sm:$0xff]
    %v165 = vld [vmem:[%s3] sm:$0xf]
    %v167 = vlaneseq
    %v168 = vshrl.u32 %v167, 7
    %v169 = vsub.s32 0, %v168
    %v170 = vrot.slane %v165, %v169
    %v171 = vlaneseq
    %v172 = vshrl.u32 %v171, 7
    %v173 = vsub.s32 1, %v172
    %v174 = vrot.slane %v165, %v173
    %v175 = vlaneseq
    %v176 = vshrl.u32 %v175, 7
    %v177 = vsub.s32 2, %v176
    %v178 = vrot.slane %v165, %v177
    %v179 = vlaneseq
    %v180 = vshrl.u32 %v179, 7
    %v181 = vsub.s32 3, %v180
    %v182 = vrot.slane %v165, %v181
    %v315 = vunpack.c.l.b16 %v37
    %v316 = vunpack.c.h.b16 %v37
    %v317 = vunpack.c.l.b16 %v38
    %v318 = vunpack.c.h.b16 %v38
    %v319 = vunpack.c.l.b16 %v39
    %v320 = vunpack.c.h.b16 %v39
    %v321 = vunpack.c.l.b16 %v40
    %v322 = vunpack.c.h.b16 %v40
    %v323 = vunpack.c.l.b16 %v41
    %v324 = vunpack.c.h.b16 %v41
    %v325 = vunpack.c.l.b16 %v42
    %v326 = vunpack.c.h.b16 %v42
    %v327 = vunpack.c.l.b16 %v43
    %v328 = vunpack.c.h.b16 %v43
    %v329 = vunpack.c.l.b16 %v44
    %v330 = vunpack.c.h.b16 %v44
    %v331 = vunpack.c.l.b16 %v45
    %v332 = vunpack.c.h.b16 %v45
    %v333 = vunpack.c.l.b16 %v46
    %v334 = vunpack.c.h.b16 %v46
    %v335 = vunpack.c.l.b16 %v47
    %v336 = vunpack.c.h.b16 %v47
    %v337 = vunpack.c.l.b16 %v48
    %v338 = vunpack.c.h.b16 %v48
    %v339 = vunpack.c.l.b16 %v49
    %v340 = vunpack.c.h.b16 %v49
    %v341 = vunpack.c.l.b16 %v50
    %v342 = vunpack.c.h.b16 %v50
    %v343 = vunpack.c.l.b16 %v51
    %v344 = vunpack.c.h.b16 %v51
    %v345 = vunpack.c.l.b16 %v52
    %v346 = vunpack.c.h.b16 %v52
    %v347 = vunpack.c.l.b16 %v53
    %v348 = vunpack.c.h.b16 %v53
    %v349 = vunpack.c.l.b16 %v54
    %v350 = vunpack.c.h.b16 %v54
    %v351 = vunpack.c.l.b16 %v55
    %v352 = vunpack.c.h.b16 %v55
    %v353 = vunpack.c.l.b16 %v56
    %v354 = vunpack.c.h.b16 %v56
    %v355 = vunpack.c.l.b16 %v57
    %v356 = vunpack.c.h.b16 %v57
    %v357 = vunpack.c.l.b16 %v58
    %v358 = vunpack.c.h.b16 %v58
    %v359 = vunpack.c.l.b16 %v59
    %v360 = vunpack.c.h.b16 %v59
    %v361 = vunpack.c.l.b16 %v60
    %v362 = vunpack.c.h.b16 %v60
    %v363 = vunpack.c.l.b16 %v61
    %v364 = vunpack.c.h.b16 %v61
    %v365 = vunpack.c.l.b16 %v62
    %v366 = vunpack.c.h.b16 %v62
    %v367 = vunpack.c.l.b16 %v63
    %v368 = vunpack.c.h.b16 %v63
    %v369 = vunpack.c.l.b16 %v64
    %v370 = vunpack.c.h.b16 %v64
    %v371 = vunpack.c.l.b16 %v65
    %v372 = vunpack.c.h.b16 %v65
    %v373 = vunpack.c.l.b16 %v66
    %v374 = vunpack.c.h.b16 %v66
    %v375 = vunpack.c.l.b16 %v67
    %v376 = vunpack.c.h.b16 %v67
    %v377 = vunpack.c.l.b16 %v68
    %v378 = vunpack.c.h.b16 %v68
    %v379 = vunpack.c.l.b16 %v69
    %v380 = vunpack.c.h.b16 %v69
    %v381 = vunpack.c.l.b16 %v70
    %v382 = vunpack.c.h.b16 %v70
    %v383 = vunpack.c.l.b16 %v71
    %v384 = vunpack.c.h.b16 %v71
    %v385 = vunpack.c.l.b16 %v72
    %v386 = vunpack.c.h.b16 %v72
    %v387 = vunpack.c.l.b16 %v73
    %v388 = vunpack.c.h.b16 %v73
    %v389 = vunpack.c.l.b16 %v74
    %v390 = vunpack.c.h.b16 %v74
    %v391 = vunpack.c.l.b16 %v75
    %v392 = vunpack.c.h.b16 %v75
    %v393 = vunpack.c.l.b16 %v76
    %v394 = vunpack.c.h.b16 %v76
    %v395 = vunpack.c.l.b16 %v77
    %v396 = vunpack.c.h.b16 %v77
    %v397 = vunpack.c.l.b16 %v78
    %v398 = vunpack.c.h.b16 %v78
    %v399 = vunpack.c.l.b16 %v79
    %v400 = vunpack.c.h.b16 %v79
    %v401 = vunpack.c.l.b16 %v80
    %v402 = vunpack.c.h.b16 %v80
    %v403 = vunpack.c.l.b16 %v81
    %v404 = vunpack.c.h.b16 %v81
    %v405 = vunpack.c.l.b16 %v82
    %v406 = vunpack.c.h.b16 %v82
    %v407 = vunpack.c.l.b16 %v83
    %v408 = vunpack.c.h.b16 %v83
    %v409 = vunpack.c.l.b16 %v84
    %v410 = vunpack.c.h.b16 %v84
    %v411 = vunpack.c.l.b16 %v85
    %v412 = vunpack.c.h.b16 %v85
    %v413 = vunpack.c.l.b16 %v86
    %v414 = vunpack.c.h.b16 %v86
    %v415 = vunpack.c.l.b16 %v87
    %v416 = vunpack.c.h.b16 %v87
    %v417 = vunpack.c.l.b16 %v88
    %v418 = vunpack.c.h.b16 %v88
    %v419 = vunpack.c.l.b16 %v89
    %v420 = vunpack.c.h.b16 %v89
    %v421 = vunpack.c.l.b16 %v90
    %v422 = vunpack.c.h.b16 %v90
    %v423 = vunpack.c.l.b16 %v91
    %v424 = vunpack.c.h.b16 %v91
    %v425 = vunpack.c.l.b16 %v92
    %v426 = vunpack.c.h.b16 %v92
    %v427 = vunpack.c.l.b16 %v93
    %v428 = vunpack.c.h.b16 %v93
    %v429 = vunpack.c.l.b16 %v94
    %v430 = vunpack.c.h.b16 %v94
    %v431 = vunpack.c.l.b16 %v95
    %v432 = vunpack.c.h.b16 %v95
    %v433 = vunpack.c.l.b16 %v96
    %v434 = vunpack.c.h.b16 %v96
    %v435 = vunpack.c.l.b16 %v97
    %v436 = vunpack.c.h.b16 %v97
    %v437 = vunpack.c.l.b16 %v98
    %v438 = vunpack.c.h.b16 %v98
    %v439 = vunpack.c.l.b16 %v99
    %v440 = vunpack.c.h.b16 %v99
    %v441 = vunpack.c.l.b16 %v100
    %v442 = vunpack.c.h.b16 %v100
    %v443 = vunpack.c.l.b16 %v101
    %v444 = vunpack.c.h.b16 %v101
    %v445 = vunpack.c.l.b16 %v102
    %v446 = vunpack.c.h.b16 %v102
    %v447 = vunpack.c.l.b16 %v103
    %v448 = vunpack.c.h.b16 %v103
    %v449 = vunpack.c.l.b16 %v104
    %v450 = vunpack.c.h.b16 %v104
    %v451 = vunpack.c.l.b16 %v105
    %v452 = vunpack.c.h.b16 %v105
    %v453 = vunpack.c.l.b16 %v106
    %v454 = vunpack.c.h.b16 %v106
    %v455 = vunpack.c.l.b16 %v107
    %v456 = vunpack.c.h.b16 %v107
    %v457 = vunpack.c.l.b16 %v108
    %v458 = vunpack.c.h.b16 %v108
    %v459 = vunpack.c.l.b16 %v109
    %v460 = vunpack.c.h.b16 %v109
    %v461 = vunpack.c.l.b16 %v110
    %v462 = vunpack.c.h.b16 %v110
    %v463 = vunpack.c.l.b16 %v111
    %v464 = vunpack.c.h.b16 %v111
    %v465 = vunpack.c.l.b16 %v112
    %v466 = vunpack.c.h.b16 %v112
    %v467 = vunpack.c.l.b16 %v113
    %v468 = vunpack.c.h.b16 %v113
    %v469 = vunpack.c.l.b16 %v114
    %v470 = vunpack.c.h.b16 %v114
    %v471 = vunpack.c.l.b16 %v115
    %v472 = vunpack.c.h.b16 %v115
    %v473 = vunpack.c.l.b16 %v116
    %v474 = vunpack.c.h.b16 %v116
    %v475 = vunpack.c.l.b16 %v117
    %v476 = vunpack.c.h.b16 %v117
    %v477 = vunpack.c.l.b16 %v118
    %v478 = vunpack.c.h.b16 %v118
    %v479 = vunpack.c.l.b16 %v119
    %v480 = vunpack.c.h.b16 %v119
    %v481 = vunpack.c.l.b16 %v120
    %v482 = vunpack.c.h.b16 %v120
    %v483 = vunpack.c.l.b16 %v121
    %v484 = vunpack.c.h.b16 %v121
    %v485 = vunpack.c.l.b16 %v122
    %v486 = vunpack.c.h.b16 %v122
    %v487 = vunpack.c.l.b16 %v123
    %v488 = vunpack.c.h.b16 %v123
    %v489 = vunpack.c.l.b16 %v124
    %v490 = vunpack.c.h.b16 %v124
    %v491 = vunpack.c.l.b16 %v125
    %v492 = vunpack.c.h.b16 %v125
    %v493 = vunpack.c.l.b16 %v126
    %v494 = vunpack.c.h.b16 %v126
    %v495 = vunpack.c.l.b16 %v127
    %v496 = vunpack.c.h.b16 %v127
    %v497 = vunpack.c.l.b16 %v128
    %v498 = vunpack.c.h.b16 %v128
    %v499 = vunpack.c.l.b16 %v129
    %v500 = vunpack.c.h.b16 %v129
    %v501 = vunpack.c.l.b16 %v130
    %v502 = vunpack.c.h.b16 %v130
    %v503 = vunpack.c.l.b16 %v131
    %v504 = vunpack.c.h.b16 %v131
    %v505 = vunpack.c.l.b16 %v132
    %v506 = vunpack.c.h.b16 %v132
    %v507 = vunpack.c.l.b16 %v133
    %v508 = vunpack.c.h.b16 %v133
    %v509 = vunpack.c.l.b16 %v134
    %v510 = vunpack.c.h.b16 %v134
    %v511 = vunpack.c.l.b16 %v135
    %v512 = vunpack.c.h.b16 %v135
    %v513 = vunpack.c.l.b16 %v136
    %v514 = vunpack.c.h.b16 %v136
    %v515 = vunpack.c.l.b16 %v137
    %v516 = vunpack.c.h.b16 %v137
    %v517 = vunpack.c.l.b16 %v138
    %v518 = vunpack.c.h.b16 %v138
    %v519 = vunpack.c.l.b16 %v139
    %v520 = vunpack.c.h.b16 %v139
    %v521 = vunpack.c.l.b16 %v140
    %v522 = vunpack.c.h.b16 %v140
    %v523 = vunpack.c.l.b16 %v141
    %v524 = vunpack.c.h.b16 %v141
    %v525 = vunpack.c.l.b16 %v142
    %v526 = vunpack.c.h.b16 %v142
    %v527 = vunpack.c.l.b16 %v143
    %v528 = vunpack.c.h.b16 %v143
    %v529 = vunpack.c.l.b16 %v144
    %v530 = vunpack.c.h.b16 %v144
    %v531 = vunpack.c.l.b16 %v145
    %v532 = vunpack.c.h.b16 %v145
    %v533 = vunpack.c.l.b16 %v146
    %v534 = vunpack.c.h.b16 %v146
    %v535 = vunpack.c.l.b16 %v147
    %v536 = vunpack.c.h.b16 %v147
    %v537 = vunpack.c.l.b16 %v148
    %v538 = vunpack.c.h.b16 %v148
    %v539 = vunpack.c.l.b16 %v149
    %v540 = vunpack.c.h.b16 %v149
    %v541 = vunpack.c.l.b16 %v150
    %v542 = vunpack.c.h.b16 %v150
    %v543 = vunpack.c.l.b16 %v151
    %v544 = vunpack.c.h.b16 %v151
    %v545 = vunpack.c.l.b16 %v152
    %v546 = vunpack.c.h.b16 %v152
    %v547 = vunpack.c.l.b16 %v153
    %v548 = vunpack.c.h.b16 %v153
    %v549 = vunpack.c.l.b16 %v154
    %v550 = vunpack.c.h.b16 %v154
    %v551 = vunpack.c.l.b16 %v155
    %v552 = vunpack.c.h.b16 %v155
    %v553 = vunpack.c.l.b16 %v156
    %v554 = vunpack.c.h.b16 %v156
    %v555 = vunpack.c.l.b16 %v157
    %v556 = vunpack.c.h.b16 %v157
    %v557 = vunpack.c.l.b16 %v158
    %v558 = vunpack.c.h.b16 %v158
    %v559 = vunpack.c.l.b16 %v159
    %v560 = vunpack.c.h.b16 %v159
    %v561 = vunpack.c.l.b16 %v160
    %v562 = vunpack.c.h.b16 %v160
    %v563 = vunpack.c.l.b16 %v161
    %v564 = vunpack.c.h.b16 %v161
    %v565 = vunpack.c.l.b16 %v162
    %v566 = vunpack.c.h.b16 %v162
    %v567 = vunpack.c.l.b16 %v163
    %v568 = vunpack.c.h.b16 %v163
    %v569 = vunpack.c.l.b16 %v164
    %v570 = vunpack.c.h.b16 %v164
    %v571 = vpack.c.b16 %v319, %v315
    %v572 = vpack.c.b16 %v320, %v316
    %v573 = vpack.c.b16 %v321, %v317
    %v574 = vpack.c.b16 %v322, %v318
    %v575 = vpack.c.b16 %v327, %v323
    %v576 = vpack.c.b16 %v328, %v324
    %v577 = vpack.c.b16 %v329, %v325
    %v578 = vpack.c.b16 %v330, %v326
    %v579 = vpack.c.b16 %v335, %v331
    %v580 = vpack.c.b16 %v336, %v332
    %v581 = vpack.c.b16 %v337, %v333
    %v582 = vpack.c.b16 %v338, %v334
    %v583 = vpack.c.b16 %v343, %v339
    %v584 = vpack.c.b16 %v344, %v340
    %v585 = vpack.c.b16 %v345, %v341
    %v586 = vpack.c.b16 %v346, %v342
    %v587 = vpack.c.b16 %v351, %v347
    %v588 = vpack.c.b16 %v352, %v348
    %v589 = vpack.c.b16 %v353, %v349
    %v590 = vpack.c.b16 %v354, %v350
    %v591 = vpack.c.b16 %v359, %v355
    %v592 = vpack.c.b16 %v360, %v356
    %v593 = vpack.c.b16 %v361, %v357
    %v594 = vpack.c.b16 %v362, %v358
    %v595 = vpack.c.b16 %v367, %v363
    %v596 = vpack.c.b16 %v368, %v364
    %v597 = vpack.c.b16 %v369, %v365
    %v598 = vpack.c.b16 %v370, %v366
    %v599 = vpack.c.b16 %v375, %v371
    %v600 = vpack.c.b16 %v376, %v372
    %v601 = vpack.c.b16 %v377, %v373
    %v602 = vpack.c.b16 %v378, %v374
    %v603 = vpack.c.b16 %v383, %v379
    %v604 = vpack.c.b16 %v384, %v380
    %v605 = vpack.c.b16 %v385, %v381
    %v606 = vpack.c.b16 %v386, %v382
    %v607 = vpack.c.b16 %v391, %v387
    %v608 = vpack.c.b16 %v392, %v388
    %v609 = vpack.c.b16 %v393, %v389
    %v610 = vpack.c.b16 %v394, %v390
    %v611 = vpack.c.b16 %v399, %v395
    %v612 = vpack.c.b16 %v400, %v396
    %v613 = vpack.c.b16 %v401, %v397
    %v614 = vpack.c.b16 %v402, %v398
    %v615 = vpack.c.b16 %v407, %v403
    %v616 = vpack.c.b16 %v408, %v404
    %v617 = vpack.c.b16 %v409, %v405
    %v618 = vpack.c.b16 %v410, %v406
    %v619 = vpack.c.b16 %v415, %v411
    %v620 = vpack.c.b16 %v416, %v412
    %v621 = vpack.c.b16 %v417, %v413
    %v622 = vpack.c.b16 %v418, %v414
    %v623 = vpack.c.b16 %v423, %v419
    %v624 = vpack.c.b16 %v424, %v420
    %v625 = vpack.c.b16 %v425, %v421
    %v626 = vpack.c.b16 %v426, %v422
    %v627 = vpack.c.b16 %v431, %v427
    %v628 = vpack.c.b16 %v432, %v428
    %v629 = vpack.c.b16 %v433, %v429
    %v630 = vpack.c.b16 %v434, %v430
    %v631 = vpack.c.b16 %v439, %v435
    %v632 = vpack.c.b16 %v440, %v436
    %v633 = vpack.c.b16 %v441, %v437
    %v634 = vpack.c.b16 %v442, %v438
    %v635 = vpack.c.b16 %v447, %v443
    %v636 = vpack.c.b16 %v448, %v444
    %v637 = vpack.c.b16 %v449, %v445
    %v638 = vpack.c.b16 %v450, %v446
    %v639 = vpack.c.b16 %v455, %v451
    %v640 = vpack.c.b16 %v456, %v452
    %v641 = vpack.c.b16 %v457, %v453
    %v642 = vpack.c.b16 %v458, %v454
    %v643 = vpack.c.b16 %v463, %v459
    %v644 = vpack.c.b16 %v464, %v460
    %v645 = vpack.c.b16 %v465, %v461
    %v646 = vpack.c.b16 %v466, %v462
    %v647 = vpack.c.b16 %v471, %v467
    %v648 = vpack.c.b16 %v472, %v468
    %v649 = vpack.c.b16 %v473, %v469
    %v650 = vpack.c.b16 %v474, %v470
    %v651 = vpack.c.b16 %v479, %v475
    %v652 = vpack.c.b16 %v480, %v476
    %v653 = vpack.c.b16 %v481, %v477
    %v654 = vpack.c.b16 %v482, %v478
    %v655 = vpack.c.b16 %v487, %v483
    %v656 = vpack.c.b16 %v488, %v484
    %v657 = vpack.c.b16 %v489, %v485
    %v658 = vpack.c.b16 %v490, %v486
    %v659 = vpack.c.b16 %v495, %v491
    %v660 = vpack.c.b16 %v496, %v492
    %v661 = vpack.c.b16 %v497, %v493
    %v662 = vpack.c.b16 %v498, %v494
    %v663 = vpack.c.b16 %v503, %v499
    %v664 = vpack.c.b16 %v504, %v500
    %v665 = vpack.c.b16 %v505, %v501
    %v666 = vpack.c.b16 %v506, %v502
    %v667 = vpack.c.b16 %v511, %v507
    %v668 = vpack.c.b16 %v512, %v508
    %v669 = vpack.c.b16 %v513, %v509
    %v670 = vpack.c.b16 %v514, %v510
    %v671 = vpack.c.b16 %v519, %v515
    %v672 = vpack.c.b16 %v520, %v516
    %v673 = vpack.c.b16 %v521, %v517
    %v674 = vpack.c.b16 %v522, %v518
    %v675 = vpack.c.b16 %v527, %v523
    %v676 = vpack.c.b16 %v528, %v524
    %v677 = vpack.c.b16 %v529, %v525
    %v678 = vpack.c.b16 %v530, %v526
    %v679 = vpack.c.b16 %v535, %v531
    %v680 = vpack.c.b16 %v536, %v532
    %v681 = vpack.c.b16 %v537, %v533
    %v682 = vpack.c.b16 %v538, %v534
    %v683 = vpack.c.b16 %v543, %v539
    %v684 = vpack.c.b16 %v544, %v540
    %v685 = vpack.c.b16 %v545, %v541
    %v686 = vpack.c.b16 %v546, %v542
    %v687 = vpack.c.b16 %v551, %v547
    %v688 = vpack.c.b16 %v552, %v548
    %v689 = vpack.c.b16 %v553, %v549
    %v690 = vpack.c.b16 %v554, %v550
    %v691 = vpack.c.b16 %v559, %v555
    %v692 = vpack.c.b16 %v560, %v556
    %v693 = vpack.c.b16 %v561, %v557
    %v694 = vpack.c.b16 %v562, %v558
    %v695 = vpack.c.b16 %v567, %v563
    %v696 = vpack.c.b16 %v568, %v564
    %v697 = vpack.c.b16 %v569, %v565
    %v698 = vpack.c.b16 %v570, %v566
    %827 = vmatprep.subr.bf16.mxu0 %v572
    %828 = vmatpush1.bf16.msra.mxu0 %v571
    %829 = vmatprep.subr.bf16.mxu0 %v576
    %830 = vmatpush1.bf16.msra.mxu0 %v575
    %831 = vmatprep.subr.bf16.mxu0 %v580
    %832 = vmatpush1.bf16.msra.mxu0 %v579
    %833 = vmatprep.subr.bf16.mxu0 %v584
    %834 = vmatpush1.bf16.msra.mxu0 %v583
    %835 = vmatprep.subr.bf16.mxu0 %v588
    %836 = vmatpush1.bf16.msra.mxu0 %v587
    %837 = vmatprep.subr.bf16.mxu0 %v592
    %838 = vmatpush1.bf16.msra.mxu0 %v591
    %839 = vmatprep.subr.bf16.mxu0 %v596
    %840 = vmatpush1.bf16.msra.mxu0 %v595
    %841 = vmatprep.subr.bf16.mxu0 %v600
    %842 = vmatpush1.bf16.msra.mxu0 %v599
    %843 = vmatprep.subr.bf16.mxu0 %v604
    %844 = vmatpush1.bf16.msra.mxu0 %v603
    %845 = vmatprep.subr.bf16.mxu0 %v608
    %846 = vmatpush1.bf16.msra.mxu0 %v607
    %847 = vmatprep.subr.bf16.mxu0 %v612
    %848 = vmatpush1.bf16.msra.mxu0 %v611
    %849 = vmatprep.subr.bf16.mxu0 %v616
    %850 = vmatpush1.bf16.msra.mxu0 %v615
    %851 = vmatprep.subr.bf16.mxu0 %v620
    %852 = vmatpush1.bf16.msra.mxu0 %v619
    %853 = vmatprep.subr.bf16.mxu0 %v624
    %854 = vmatpush1.bf16.msra.mxu0 %v623
    %855 = vmatprep.subr.bf16.mxu0 %v628
    %856 = vmatpush1.bf16.msra.mxu0 %v627
    %857 = vmatprep.subr.bf16.mxu0 %v632
    %858 = vmatpush1.bf16.msra.mxu0 %v631
    %859 = vmatprep.mubr.bf16.mxu0 %v34
    %860 = vmatmul.mubr.bf16.gmra.mrb[0].mxu0 %v33
    %v861 = vpop.f32.mrb[0].mxu0
    %v862 = vadd.f32 %v170, %v861
    %v863 = vpop.f32.mrb[0].mxu0
    %v864 = vadd.f32 %v174, %v863
    %v865 = vpop.f32.mrb[0].mxu0
    %v866 = vadd.f32 %v170, %v865
    %v867 = vpop.f32.mrb[0].mxu0
    %v868 = vadd.f32 %v174, %v867
    %869 = vdwg.mxu0
    %870 = vmatprep.subr.bf16.mxu0 %v636
    %871 = vmatpush1.bf16.msra.mxu0 %v635
    %872 = vmatprep.subr.bf16.mxu0 %v640
    %873 = vmatpush1.bf16.msra.mxu0 %v639
    %874 = vmatprep.subr.bf16.mxu0 %v644
    %875 = vmatpush1.bf16.msra.mxu0 %v643
    %876 = vmatprep.subr.bf16.mxu0 %v648
    %877 = vmatpush1.bf16.msra.mxu0 %v647
    %878 = vmatprep.subr.bf16.mxu0 %v652
    %879 = vmatpush1.bf16.msra.mxu0 %v651
    %880 = vmatprep.subr.bf16.mxu0 %v656
    %881 = vmatpush1.bf16.msra.mxu0 %v655
    %882 = vmatprep.subr.bf16.mxu0 %v660
    %883 = vmatpush1.bf16.msra.mxu0 %v659
    %884 = vmatprep.subr.bf16.mxu0 %v664
    %885 = vmatpush1.bf16.msra.mxu0 %v663
    %886 = vmatprep.subr.bf16.mxu0 %v668
    %887 = vmatpush1.bf16.msra.mxu0 %v667
    %888 = vmatprep.subr.bf16.mxu0 %v672
    %889 = vmatpush1.bf16.msra.mxu0 %v671
    %890 = vmatprep.subr.bf16.mxu0 %v676
    %891 = vmatpush1.bf16.msra.mxu0 %v675
    %892 = vmatprep.subr.bf16.mxu0 %v680
    %893 = vmatpush1.bf16.msra.mxu0 %v679
    %894 = vmatprep.subr.bf16.mxu0 %v684
    %895 = vmatpush1.bf16.msra.mxu0 %v683
    %896 = vmatprep.subr.bf16.mxu0 %v688
    %897 = vmatpush1.bf16.msra.mxu0 %v687
    %898 = vmatprep.subr.bf16.mxu0 %v692
    %899 = vmatpush1.bf16.msra.mxu0 %v691
    %900 = vmatprep.subr.bf16.mxu0 %v696
    %901 = vmatpush1.bf16.msra.mxu0 %v695
    %902 = vmatprep.mubr.bf16.mxu0 %v36
    %903 = vmatmul.mubr.bf16.gmra.mrb[0].mxu0 %v35
    %v904 = vpop.f32.mrb[0].mxu0
    %v905 = vadd.f32 %v862, %v904
    %v906 = vpop.f32.mrb[0].mxu0
    %v907 = vadd.f32 %v864, %v906
    %v908 = vpop.f32.mrb[0].mxu0
    %v909 = vadd.f32 %v866, %v908
    %v910 = vpop.f32.mrb[0].mxu0
    %v911 = vadd.f32 %v868, %v910
    %912 = vdwg.mxu0
    %913 = vmatprep.subr.bf16.mxu0 %v574
    %914 = vmatpush1.bf16.msra.mxu0 %v573
    %915 = vmatprep.subr.bf16.mxu0 %v578
    %916 = vmatpush1.bf16.msra.mxu0 %v577
    %917 = vmatprep.subr.bf16.mxu0 %v582
    %918 = vmatpush1.bf16.msra.mxu0 %v581
    %919 = vmatprep.subr.bf16.mxu0 %v586
    %920 = vmatpush1.bf16.msra.mxu0 %v585
    %921 = vmatprep.subr.bf16.mxu0 %v590
    %922 = vmatpush1.bf16.msra.mxu0 %v589
    %923 = vmatprep.subr.bf16.mxu0 %v594
    %924 = vmatpush1.bf16.msra.mxu0 %v593
    %925 = vmatprep.subr.bf16.mxu0 %v598
    %926 = vmatpush1.bf16.msra.mxu0 %v597
    %927 = vmatprep.subr.bf16.mxu0 %v602
    %928 = vmatpush1.bf16.msra.mxu0 %v601
    %929 = vmatprep.subr.bf16.mxu0 %v606
    %930 = vmatpush1.bf16.msra.mxu0 %v605
    %931 = vmatprep.subr.bf16.mxu0 %v610
    %932 = vmatpush1.bf16.msra.mxu0 %v609
    %933 = vmatprep.subr.bf16.mxu0 %v614
    %934 = vmatpush1.bf16.msra.mxu0 %v613
    %935 = vmatprep.subr.bf16.mxu0 %v618
    %936 = vmatpush1.bf16.msra.mxu0 %v617
    %937 = vmatprep.subr.bf16.mxu0 %v622
    %938 = vmatpush1.bf16.msra.mxu0 %v621
    %939 = vmatprep.subr.bf16.mxu0 %v626
    %940 = vmatpush1.bf16.msra.mxu0 %v625
    %941 = vmatprep.subr.bf16.mxu0 %v630
    %942 = vmatpush1.bf16.msra.mxu0 %v629
    %943 = vmatprep.subr.bf16.mxu0 %v634
    %944 = vmatpush1.bf16.msra.mxu0 %v633
    %945 = vmatprep.mubr.bf16.mxu0 %v34
    %946 = vmatmul.mubr.bf16.gmra.mrb[0].mxu0 %v33
    %v947 = vpop.f32.mrb[0].mxu0
    %v948 = vadd.f32 %v178, %v947
    %v949 = vpop.f32.mrb[0].mxu0
    %v950 = vadd.f32 %v182, %v949
    %v951 = vpop.f32.mrb[0].mxu0
    %v952 = vadd.f32 %v178, %v951
    %v953 = vpop.f32.mrb[0].mxu0
    %v954 = vadd.f32 %v182, %v953
    %955 = vdwg.mxu0
    %956 = vmatprep.subr.bf16.mxu0 %v638
    %957 = vmatpush1.bf16.msra.mxu0 %v637
    %958 = vmatprep.subr.bf16.mxu0 %v642
    %959 = vmatpush1.bf16.msra.mxu0 %v641
    %960 = vmatprep.subr.bf16.mxu0 %v646
    %961 = vmatpush1.bf16.msra.mxu0 %v645
    %962 = vmatprep.subr.bf16.mxu0 %v650
    %963 = vmatpush1.bf16.msra.mxu0 %v649
    %964 = vmatprep.subr.bf16.mxu0 %v654
    %965 = vmatpush1.bf16.msra.mxu0 %v653
    %966 = vmatprep.subr.bf16.mxu0 %v658
    %967 = vmatpush1.bf16.msra.mxu0 %v657
    %968 = vmatprep.subr.bf16.mxu0 %v662
    %969 = vmatpush1.bf16.msra.mxu0 %v661
    %970 = vmatprep.subr.bf16.mxu0 %v666
    %971 = vmatpush1.bf16.msra.mxu0 %v665
    %972 = vmatprep.subr.bf16.mxu0 %v670
    %973 = vmatpush1.bf16.msra.mxu0 %v669
    %974 = vmatprep.subr.bf16.mxu0 %v674
    %975 = vmatpush1.bf16.msra.mxu0 %v673
    %976 = vmatprep.subr.bf16.mxu0 %v678
    %977 = vmatpush1.bf16.msra.mxu0 %v677
    %978 = vmatprep.subr.bf16.mxu0 %v682
    %979 = vmatpush1.bf16.msra.mxu0 %v681
    %980 = vmatprep.subr.bf16.mxu0 %v686
    %981 = vmatpush1.bf16.msra.mxu0 %v685
    %982 = vmatprep.subr.bf16.mxu0 %v690
    %983 = vmatpush1.bf16.msra.mxu0 %v689
    %984 = vmatprep.subr.bf16.mxu0 %v694
    %985 = vmatpush1.bf16.msra.mxu0 %v693
    %986 = vmatprep.subr.bf16.mxu0 %v698
    %987 = vmatpush1.bf16.msra.mxu0 %v697
    %988 = vmatprep.mubr.bf16.mxu0 %v36
    %989 = vmatmul.mubr.bf16.gmra.mrb[0].mxu0 %v35
    %v990 = vpop.f32.mrb[0].mxu0
    %v991 = vadd.f32 %v948, %v990
    %v992 = vpop.f32.mrb[0].mxu0
    %v993 = vadd.f32 %v950, %v992
    %v994 = vpop.f32.mrb[0].mxu0
    %v995 = vadd.f32 %v952, %v994
    %v996 = vpop.f32.mrb[0].mxu0
    %v997 = vadd.f32 %v954, %v996
    %998 = vdwg.mxu0
    %v999 = vmax.f32 %v905, 0.0
    %v1000 = vmax.f32 %v907, 0.0
    %v1001 = vmax.f32 %v991, 0.0
    %v1002 = vmax.f32 %v993, 0.0
    %v1003 = vmax.f32 %v909, 0.0
    %v1004 = vmax.f32 %v911, 0.0
    %v1005 = vmax.f32 %v995, 0.0
    %v1006 = vmax.f32 %v997, 0.0
    %v1007 = vld [vmem:[%s1] sm:$0xf]
    %v1008 = vld [vmem:[%s1 + $0x4] sm:$0xf]
    %v1009 = vld [vmem:[%s4] sm:$0xff]
    %v1010 = vld [vmem:[%s4 + $0x8] sm:$0xff]
    %v1011 = vld [vmem:[%s4 + $0x10] sm:$0xff]
    %v1012 = vld [vmem:[%s4 + $0x18] sm:$0xff]
    %v1013 = vld [vmem:[%s4 + $0x20] sm:$0xff]
    %v1014 = vld [vmem:[%s4 + $0x28] sm:$0xff]
    %v1015 = vld [vmem:[%s4 + $0x30] sm:$0xff]
    %v1016 = vld [vmem:[%s4 + $0x38] sm:$0xff]
    %v1017 = vld [vmem:[%s4 + $0x40] sm:$0xff]
    %v1018 = vld [vmem:[%s4 + $0x48] sm:$0xff]
    %v1019 = vld [vmem:[%s4 + $0x50] sm:$0xff]
    %v1020 = vld [vmem:[%s4 + $0x58] sm:$0xff]
    %v1021 = vld [vmem:[%s4 + $0x60] sm:$0xff]
    %v1022 = vld [vmem:[%s4 + $0x68] sm:$0xff]
    %v1023 = vld [vmem:[%s4 + $0x70] sm:$0xff]
    %v1024 = vld [vmem:[%s4 + $0x78] sm:$0xff]
    %v1025 = vld [vmem:[%s4 + $0x80] sm:$0xff]
    %v1026 = vld [vmem:[%s4 + $0x88] sm:$0xff]
    %v1027 = vld [vmem:[%s4 + $0x90] sm:$0xff]
    %v1028 = vld [vmem:[%s4 + $0x98] sm:$0xff]
    %v1029 = vld [vmem:[%s4 + $0xa0] sm:$0xff]
    %v1030 = vld [vmem:[%s4 + $0xa8] sm:$0xff]
    %v1031 = vld [vmem:[%s4 + $0xb0] sm:$0xff]
    %v1032 = vld [vmem:[%s4 + $0xb8] sm:$0xff]
    %v1033 = vld [vmem:[%s4 + $0xc0] sm:$0xff]
    %v1034 = vld [vmem:[%s4 + $0xc8] sm:$0xff]
    %v1035 = vld [vmem:[%s4 + $0xd0] sm:$0xff]
    %v1036 = vld [vmem:[%s4 + $0xd8] sm:$0xff]
    %v1037 = vld [vmem:[%s4 + $0xe0] sm:$0xff]
    %v1038 = vld [vmem:[%s4 + $0xe8] sm:$0xff]
    %v1039 = vld [vmem:[%s4 + $0xf0] sm:$0xff]
    %v1040 = vld [vmem:[%s4 + $0xf8] sm:$0xff]
    %v1041 = vld [vmem:[%s5] sm:$0xf]
    %v1043 = vlaneseq
    %v1044 = vshrl.u32 %v1043, 7
    %v1045 = vsub.s32 0, %v1044
    %v1046 = vrot.slane %v1041, %v1045
    %v1047 = vlaneseq
    %v1048 = vshrl.u32 %v1047, 7
    %v1049 = vsub.s32 1, %v1048
    %v1050 = vrot.slane %v1041, %v1049
    %v1051 = vlaneseq
    %v1052 = vshrl.u32 %v1051, 7
    %v1053 = vsub.s32 2, %v1052
    %v1054 = vrot.slane %v1041, %v1053
    %v1055 = vlaneseq
    %v1056 = vshrl.u32 %v1055, 7
    %v1057 = vsub.s32 3, %v1056
    %v1058 = vrot.slane %v1041, %v1057
    %v1065 = vunpack.c.l.b16 %v1007
    %v1066 = vunpack.c.l.b16 %v1008
    %v1067 = vpack.c.b16 %v1066, %v1065
    %v1101 = vunpack.c.l.b16 %v1009
    %v1102 = vunpack.c.h.b16 %v1009
    %v1103 = vunpack.c.l.b16 %v1010
    %v1104 = vunpack.c.h.b16 %v1010
    %v1105 = vunpack.c.l.b16 %v1011
    %v1106 = vunpack.c.h.b16 %v1011
    %v1107 = vunpack.c.l.b16 %v1012
    %v1108 = vunpack.c.h.b16 %v1012
    %v1109 = vunpack.c.l.b16 %v1013
    %v1110 = vunpack.c.h.b16 %v1013
    %v1111 = vunpack.c.l.b16 %v1014
    %v1112 = vunpack.c.h.b16 %v1014
    %v1113 = vunpack.c.l.b16 %v1015
    %v1114 = vunpack.c.h.b16 %v1015
    %v1115 = vunpack.c.l.b16 %v1016
    %v1116 = vunpack.c.h.b16 %v1016
    %v1117 = vunpack.c.l.b16 %v1017
    %v1118 = vunpack.c.h.b16 %v1017
    %v1119 = vunpack.c.l.b16 %v1018
    %v1120 = vunpack.c.h.b16 %v1018
    %v1121 = vunpack.c.l.b16 %v1019
    %v1122 = vunpack.c.h.b16 %v1019
    %v1123 = vunpack.c.l.b16 %v1020
    %v1124 = vunpack.c.h.b16 %v1020
    %v1125 = vunpack.c.l.b16 %v1021
    %v1126 = vunpack.c.h.b16 %v1021
    %v1127 = vunpack.c.l.b16 %v1022
    %v1128 = vunpack.c.h.b16 %v1022
    %v1129 = vunpack.c.l.b16 %v1023
    %v1130 = vunpack.c.h.b16 %v1023
    %v1131 = vunpack.c.l.b16 %v1024
    %v1132 = vunpack.c.h.b16 %v1024
    %v1133 = vunpack.c.l.b16 %v1025
    %v1134 = vunpack.c.h.b16 %v1025
    %v1135 = vunpack.c.l.b16 %v1026
    %v1136 = vunpack.c.h.b16 %v1026
    %v1137 = vunpack.c.l.b16 %v1027
    %v1138 = vunpack.c.h.b16 %v1027
    %v1139 = vunpack.c.l.b16 %v1028
    %v1140 = vunpack.c.h.b16 %v1028
    %v1141 = vunpack.c.l.b16 %v1029
    %v1142 = vunpack.c.h.b16 %v1029
    %v1143 = vunpack.c.l.b16 %v1030
    %v1144 = vunpack.c.h.b16 %v1030
    %v1145 = vunpack.c.l.b16 %v1031
    %v1146 = vunpack.c.h.b16 %v1031
    %v1147 = vunpack.c.l.b16 %v1032
    %v1148 = vunpack.c.h.b16 %v1032
    %v1149 = vunpack.c.l.b16 %v1033
    %v1150 = vunpack.c.h.b16 %v1033
    %v1151 = vunpack.c.l.b16 %v1034
    %v1152 = vunpack.c.h.b16 %v1034
    %v1153 = vunpack.c.l.b16 %v1035
    %v1154 = vunpack.c.h.b16 %v1035
    %v1155 = vunpack.c.l.b16 %v1036
    %v1156 = vunpack.c.h.b16 %v1036
    %v1157 = vunpack.c.l.b16 %v1037
    %v1158 = vunpack.c.h.b16 %v1037
    %v1159 = vunpack.c.l.b16 %v1038
    %v1160 = vunpack.c.h.b16 %v1038
    %v1161 = vunpack.c.l.b16 %v1039
    %v1162 = vunpack.c.h.b16 %v1039
    %v1163 = vunpack.c.l.b16 %v1040
    %v1164 = vunpack.c.h.b16 %v1040
    %v1165 = vpack.c.b16 %v1105, %v1101
    %v1166 = vpack.c.b16 %v1106, %v1102
    %v1167 = vpack.c.b16 %v1107, %v1103
    %v1168 = vpack.c.b16 %v1108, %v1104
    %v1169 = vpack.c.b16 %v1113, %v1109
    %v1170 = vpack.c.b16 %v1114, %v1110
    %v1171 = vpack.c.b16 %v1115, %v1111
    %v1172 = vpack.c.b16 %v1116, %v1112
    %v1173 = vpack.c.b16 %v1121, %v1117
    %v1174 = vpack.c.b16 %v1122, %v1118
    %v1175 = vpack.c.b16 %v1123, %v1119
    %v1176 = vpack.c.b16 %v1124, %v1120
    %v1177 = vpack.c.b16 %v1129, %v1125
    %v1178 = vpack.c.b16 %v1130, %v1126
    %v1179 = vpack.c.b16 %v1131, %v1127
    %v1180 = vpack.c.b16 %v1132, %v1128
    %v1181 = vpack.c.b16 %v1137, %v1133
    %v1182 = vpack.c.b16 %v1138, %v1134
    %v1183 = vpack.c.b16 %v1139, %v1135
    %v1184 = vpack.c.b16 %v1140, %v1136
    %v1185 = vpack.c.b16 %v1145, %v1141
    %v1186 = vpack.c.b16 %v1146, %v1142
    %v1187 = vpack.c.b16 %v1147, %v1143
    %v1188 = vpack.c.b16 %v1148, %v1144
    %v1189 = vpack.c.b16 %v1153, %v1149
    %v1190 = vpack.c.b16 %v1154, %v1150
    %v1191 = vpack.c.b16 %v1155, %v1151
    %v1192 = vpack.c.b16 %v1156, %v1152
    %v1193 = vpack.c.b16 %v1161, %v1157
    %v1194 = vpack.c.b16 %v1162, %v1158
    %v1195 = vpack.c.b16 %v1163, %v1159
    %v1196 = vpack.c.b16 %v1164, %v1160
    %1229 = vmatprep.subr.bf16.mxu0 %v1166
    %1230 = vmatpush1.bf16.msra.mxu0 %v1165
    %1231 = vmatprep.subr.bf16.mxu0 %v1170
    %1232 = vmatpush1.bf16.msra.mxu0 %v1169
    %1233 = vmatprep.subr.bf16.mxu0 %v1174
    %1234 = vmatpush1.bf16.msra.mxu0 %v1173
    %1235 = vmatprep.subr.bf16.mxu0 %v1178
    %1236 = vmatpush1.bf16.msra.mxu0 %v1177
    %1237 = vmatprep.subr.bf16.mxu0 %v1182
    %1238 = vmatpush1.bf16.msra.mxu0 %v1181
    %1239 = vmatprep.subr.bf16.mxu0 %v1186
    %1240 = vmatpush1.bf16.msra.mxu0 %v1185
    %1241 = vmatprep.subr.bf16.mxu0 %v1190
    %1242 = vmatpush1.bf16.msra.mxu0 %v1189
    %1243 = vmatprep.subr.bf16.mxu0 %v1194
    %1244 = vmatpush1.bf16.msra.mxu0 %v1193
    %1245 = vmatprep.subr.bf16.mxu0 0
    %1246 = vmatpush1.bf16.msra.mxu0 0
    %1247 = vmatprep.subr.bf16.mxu0 0
    %1248 = vmatpush1.bf16.msra.mxu0 0
    %1249 = vmatprep.subr.bf16.mxu0 0
    %1250 = vmatpush1.bf16.msra.mxu0 0
    %1251 = vmatprep.subr.bf16.mxu0 0
    %1252 = vmatpush1.bf16.msra.mxu0 0
    %1253 = vmatprep.subr.bf16.mxu0 0
    %1254 = vmatpush1.bf16.msra.mxu0 0
    %1255 = vmatprep.subr.bf16.mxu0 0
    %1256 = vmatpush1.bf16.msra.mxu0 0
    %1257 = vmatprep.subr.bf16.mxu0 0
    %1258 = vmatpush1.bf16.msra.mxu0 0
    %1259 = vmatprep.subr.bf16.mxu0 0
    %1260 = vmatpush1.bf16.msra.mxu0 0
    %1261 = vmatprep.mubr.bf16.mxu0 0
    %1262 = vmatmul.mubr.bf16.gmra.mrb[0].mxu0 %v1067
    %v1263 = vpop.f32.mrb[0].mxu0
    %v1264 = vadd.f32 %v1046, %v1263
    %v1265 = vpop.f32.mrb[0].mxu0
    %v1266 = vadd.f32 %v1050, %v1265
    %v1267 = vpop.f32.mrb[0].mxu0
    %v1268 = vadd.f32 %v1046, %v1267
    %v1269 = vpop.f32.mrb[0].mxu0
    %v1270 = vadd.f32 %v1050, %v1269
    %1271 = vdwg.mxu0
    %1272 = vmatprep.subr.bf16.mxu0 %v1168
    %1273 = vmatpush1.bf16.msra.mxu0 %v1167
    %1274 = vmatprep.subr.bf16.mxu0 %v1172
    %1275 = vmatpush1.bf16.msra.mxu0 %v1171
    %1276 = vmatprep.subr.bf16.mxu0 %v1176
    %1277 = vmatpush1.bf16.msra.mxu0 %v1175
    %1278 = vmatprep.subr.bf16.mxu0 %v1180
    %1279 = vmatpush1.bf16.msra.mxu0 %v1179
    %1280 = vmatprep.subr.bf16.mxu0 %v1184
    %1281 = vmatpush1.bf16.msra.mxu0 %v1183
    %1282 = vmatprep.subr.bf16.mxu0 %v1188
    %1283 = vmatpush1.bf16.msra.mxu0 %v1187
    %1284 = vmatprep.subr.bf16.mxu0 %v1192
    %1285 = vmatpush1.bf16.msra.mxu0 %v1191
    %1286 = vmatprep.subr.bf16.mxu0 %v1196
    %1287 = vmatpush1.bf16.msra.mxu0 %v1195
    %1288 = vmatprep.subr.bf16.mxu0 0
    %1289 = vmatpush1.bf16.msra.mxu0 0
    %1290 = vmatprep.subr.bf16.mxu0 0
    %1291 = vmatpush1.bf16.msra.mxu0 0
    %1292 = vmatprep.subr.bf16.mxu0 0
    %1293 = vmatpush1.bf16.msra.mxu0 0
    %1294 = vmatprep.subr.bf16.mxu0 0
    %1295 = vmatpush1.bf16.msra.mxu0 0
    %1296 = vmatprep.subr.bf16.mxu0 0
    %1297 = vmatpush1.bf16.msra.mxu0 0
    %1298 = vmatprep.subr.bf16.mxu0 0
    %1299 = vmatpush1.bf16.msra.mxu0 0
    %1300 = vmatprep.subr.bf16.mxu0 0
    %1301 = vmatpush1.bf16.msra.mxu0 0
    %1302 = vmatprep.subr.bf16.mxu0 0
    %1303 = vmatpush1.bf16.msra.mxu0 0
    %1304 = vmatprep.mubr.bf16.mxu0 0
    %1305 = vmatmul.mubr.bf16.gmra.mrb[0].mxu0 %v1067
    %v1306 = vpop.f32.mrb[0].mxu0
    %v1307 = vadd.f32 %v1054, %v1306
    %v1308 = vpop.f32.mrb[0].mxu0
    %v1309 = vadd.f32 %v1058, %v1308
    %v1310 = vpop.f32.mrb[0].mxu0
    %v1311 = vadd.f32 %v1054, %v1310
    %v1312 = vpop.f32.mrb[0].mxu0
    %v1313 = vadd.f32 %v1058, %v1312
    %1314 = vdwg.mxu0
    %v1315 = vmax.f32 %v1264, 0.0
    %v1316 = vmax.f32 %v1266, 0.0
    %v1317 = vmax.f32 %v1307, 0.0
    %v1318 = vmax.f32 %v1309, 0.0
    %v1319 = vmax.f32 %v1268, 0.0
    %v1320 = vmax.f32 %v1270, 0.0
    %v1321 = vmax.f32 %v1311, 0.0
    %v1322 = vmax.f32 %v1313, 0.0
    %v1323 = vadd.f32 %v999, %v1315
    %v1324 = vadd.f32 %v1000, %v1316
    %v1325 = vadd.f32 %v1001, %v1317
    %v1326 = vadd.f32 %v1002, %v1318
    %v1327 = vadd.f32 %v1003, %v1319
    %v1328 = vadd.f32 %v1004, %v1320
    %v1329 = vadd.f32 %v1005, %v1321
    %v1330 = vadd.f32 %v1006, %v1322
    %v1331 = vtanh.pop %v1323
    %v1332 = vtanh.pop %v1324
    %v1333 = vtanh.pop %v1325
    %v1334 = vtanh.pop %v1326
    %v1335 = vtanh.pop %v1327
    %v1336 = vtanh.pop %v1328
    %v1337 = vtanh.pop %v1329
    %v1338 = vtanh.pop %v1330
    %v1339 = vmul.f32 %v1331, 1.442695
    %v1340 = vpow.pop %v1339
    %v1341 = vmul.f32 %v1332, 1.442695
    %v1342 = vpow.pop %v1341
    %v1343 = vmul.f32 %v1333, 1.442695
    %v1344 = vpow.pop %v1343
    %v1345 = vmul.f32 %v1334, 1.442695
    %v1346 = vpow.pop %v1345
    %v1347 = vmul.f32 %v1335, 1.442695
    %v1348 = vpow.pop %v1347
    %v1349 = vmul.f32 %v1336, 1.442695
    %v1350 = vpow.pop %v1349
    %v1351 = vmul.f32 %v1337, 1.442695
    %v1352 = vpow.pop %v1351
    %v1353 = vmul.f32 %v1338, 1.442695
    %v1354 = vpow.pop %v1353
    %v1355 = vadd.f32 %v1340, %v1342
    %v1356 = vadd.f32 %v1355, %v1344
    %v1357 = vadd.f32 %v1356, %v1346
    %1358 = vadd.xlane.f32.xlu0 %v1357
    %v1359 = vpop.xlane.xlu0 %1358
    %v1360 = vadd.f32 %v1348, %v1350
    %v1361 = vadd.f32 %v1360, %v1352
    %v1362 = vadd.f32 %v1361, %v1354
    %1363 = vadd.xlane.f32.xlu0 %v1362
    %v1364 = vpop.xlane.xlu0 %1363
    %v1365 = vrcp.pop %v1359
    %v1366 = vrcp.pop %v1364
    %v1367 = vmul.f32 %v1340, %v1365
    %v1368 = vmul.f32 %v1342, %v1365
    %v1369 = vmul.f32 %v1344, %v1365
    %v1370 = vmul.f32 %v1346, %v1365
    %v1371 = vmul.f32 %v1348, %v1366
    %v1372 = vmul.f32 %v1350, %v1366
    %v1373 = vmul.f32 %v1352, %v1366
    %v1374 = vmul.f32 %v1354, %v1366
    %v1375 = vmul.f32 %v25, %v1367
    %v1376 = vmul.f32 %v26, %v1368
    %v1377 = vmul.f32 %v27, %v1369
    %v1378 = vmul.f32 %v28, %v1370
    %v1379 = vmul.f32 %v29, %v1371
    %v1380 = vmul.f32 %v30, %v1372
    %v1381 = vmul.f32 %v31, %v1373
    %v1382 = vmul.f32 %v32, %v1374
    %1383 = vst [vmem:[#allocation2] sm:$0xff] %v1375
    %1384 = vst [vmem:[#allocation2 + $0x8] sm:$0xff] %v1376
    %1385 = vst [vmem:[#allocation2 + $0x10] sm:$0xff] %v1377
    %1386 = vst [vmem:[#allocation2 + $0x18] sm:$0xff] %v1378
    %1387 = vst [vmem:[#allocation2 + $0x20] sm:$0xff] %v1379
    %1388 = vst [vmem:[#allocation2 + $0x28] sm:$0xff] %v1380
    %1389 = vst [vmem:[#allocation2 + $0x30] sm:$0xff] %v1381
    %1390 = vst [vmem:[#allocation2 + $0x38] sm:$0xff] %v1382
    // Predicated region
    $region26: #{audio_guided_attention.1} parent=1 // pred_check
      _
    $region27: #{audio_guided_attention.1} parent=1 // pred_check_branch
      %1392 = sbr.rel (0) target = $region29
    $region28: #{audio_guided_attention.1} parent=1 // pred_region
      %s1394 = ssub.s32 1024, 1024
      %1395 = vsyncadd [#allocation3], %s1394
      %s1396 = sshll.u32 [#allocation2], 4
      %s1397 = int_to_ptr.vmem [resolvable:$true] %s1396
      %1402 = dma.vmem_to_hbm [thread:$0]  %s1397, 1024, %s6, [#allocation3], 512, 512, 32
    $region29: #{audio_guided_attention.1} parent=1 // pred_fallthru
      _
    // Predicated region
    $region30: #{audio_guided_attention.1} parent=1 // pred_check
      _
    $region31: #{audio_guided_attention.1} parent=1 // pred_check_branch
      %1404 = sbr.rel (0) target = $region33
    $region32: #{audio_guided_attention.1} parent=1 // pred_region
      %1405 = dma.done [#allocation3], 1024
    $region33: #{audio_guided_attention.1} parent=1 // pred_fallthru
      _
    %1406 = vsyncpa [#allocation3], 1

</llo_original>
